<compile_context>
chip_gen: v6e
topology: v6e:2x2x1
jax: 0.10.0
libtpu: 0.0.40
codegen_flags: <defaults>
</compile_context>

<pallas_src>
import math
import numpy as np
import jax
import jax.numpy as jnp
from jax.experimental import pallas as pl
from jax.experimental.pallas import tpu as pltpu

# ----------------------------------------------------------------------------
# Parameter construction (plain numpy/JAX glue, deterministic, no file I/O)
# ----------------------------------------------------------------------------

def get_rotation_matrix(phi, theta, psi):
    """R = Rz(psi) @ Ry(theta) @ Rx(phi) (roll/pitch/yaw)."""
    cx, sx = math.cos(phi), math.sin(phi)
    cy, sy = math.cos(theta), math.sin(theta)
    cz, sz = math.cos(psi), math.sin(psi)
    Rx = np.array([[1, 0, 0], [0, cx, -sx], [0, sx, cx]], dtype=np.float64)
    Ry = np.array([[cy, 0, sy], [0, 1, 0], [-sy, 0, cy]], dtype=np.float64)
    Rz = np.array([[cz, -sz, 0], [sz, cz, 0], [0, 0, 1]], dtype=np.float64)
    return Rz @ Ry @ Rx


def get_grid_tdesign3():
    """Octahedron vertices: a spherical 3-design (t_design_degree=3, 6 dirs)."""
    return np.array(
        [[1, 0, 0], [-1, 0, 0], [0, 1, 0], [0, -1, 0], [0, 0, 1], [0, 0, -1]],
        dtype=np.float64,
    )


def sh_matrix_order1(vecs):
    """Real (N3D, ACN-ordered) spherical harmonics up to order 1 from unit
    cartesian directions. Columns: [Y00, Y1-1, Y10, Y11]."""
    x, y, z = vecs[:, 0], vecs[:, 1], vecs[:, 2]
    c0 = np.full_like(x, math.sqrt(1.0 / (4.0 * math.pi)))
    c1 = math.sqrt(3.0 / (4.0 * math.pi))
    return np.stack([c0, c1 * y, c1 * z, c1 * x], axis=1)  # (n_dirs, 4)


def compute_T_mat_and_R(rotation_angles_rad):
    """Replicates SphericalRotation.__init__ (mode='single', backend='basic',
    order_input = order_output = 1)."""
    R = get_rotation_matrix(*rotation_angles_rad)            # (3, 3)
    grid = get_grid_tdesign3()                                # (n_dirs, 3)
    n_dirs = grid.shape[0]
    Y = sh_matrix_order1(grid)                                # unrotated dirs
    W = sh_matrix_order1(grid @ R)                            # rotated dirs
    T_mat = (4.0 * math.pi / n_dirs) * (Y.T @ W)              # (4, 4)
    return jnp.asarray(T_mat, jnp.float32), jnp.asarray(R, jnp.float32)


# ----------------------------------------------------------------------------
# Pallas kernel: out[b] = M @ X[b]  for a small (<=8 x <=8) matrix M
# ----------------------------------------------------------------------------

LANE = 512                         # lane-dim tile width (multiple of 128)
_TARGET_STEP_BYTES = 4 << 20       # ~4 MiB combined in+out traffic per step
_MIN_STEP_BYTES = 1 << 20          # never shrink below ~1 MiB/step for balance
_MIN_PALLAS_BYTES = 128 * 1024     # below this, a pallas_call is pure overhead


def _make_rotation_kernel(cout: int, cin: int):
    """Kernel closed over the (static) small-matrix dims."""
    def kernel(m_ref, x_ref, o_ref):
        # m_ref: SMEM (cout, cin)
        # x_ref: VMEM (1, cin, rows, LANE)   o_ref: VMEM (1, cout, rows, LANE)
        # Read the Cout*Cin scalars once per tile (cheap SMEM scalar loads).
        m = [[m_ref[co, ci] for ci in range(cin)] for co in range(cout)]
        # Dense per-channel slabs: (rows, LANE) unmasked loads/stores.
        xs = [x_ref[0, ci, :, :] for ci in range(cin)]
        for co in range(cout):                       # unrolled at trace time
            acc = m[co][0] * xs[0]                   # scalar-broadcast FMA (VPU)
            for ci in range(1, cin):
                acc = acc + m[co][ci] * xs[ci]
            o_ref[0, co, :, :] = acc
    return kernel


def _choose_rows(n_rows: int, batch: int, lane: int, cin: int, cout: int) -> int:
    """Pick a power-of-two row-block so per-step in+out traffic is ~4 MiB,
    but keep >= ~8 grid steps (v7x 2-TC balance) without dropping below
    ~1 MiB/step.  Full-extent blocks are always legal regardless of the
    (8,128) rule."""
    bytes_per_row = (cin + cout) * lane * 4
    rows = 8
    while rows * 2 * bytes_per_row <= _TARGET_STEP_BYTES:
        rows *= 2
    if rows >= n_rows:
        return n_rows                                # full dim -> always legal
    floor = 8
    while floor * 2 * bytes_per_row <= _MIN_STEP_BYTES:
        floor *= 2
    while rows > floor and batch * pl.cdiv(n_rows, rows) < 8:
        rows //= 2
    return rows


def _pallas_apply(M, X4):
    """M: (Cout, Cin); X4: (B, Cin, n_rows, LANE) -> (B, Cout, n_rows, LANE)."""
    B, Cin, n_rows, lane = X4.shape
    Cout = M.shape[0]
    rows = _choose_rows(n_rows, B, lane, Cin, Cout)
    grid = (B, pl.cdiv(n_rows, rows))

    # TODO(synk): if the caller donates X and Cout == Cin, adding
    # input_output_aliases={1: 0} would reuse the input HBM buffer.
    return pl.pallas_call(
        _make_rotation_kernel(Cout, Cin),
        out_shape=jax.ShapeDtypeStruct((B, Cout, n_rows, lane), jnp.float32),
        grid_spec=pltpu.PrefetchScalarGridSpec(
            num_scalar_prefetch=0,
            grid=grid,
            in_specs=[
                # Small rotation matrix: whole array in SMEM (scalar reads).
                pl.BlockSpec(memory_space=pltpu.MemorySpace.SMEM),
                # Signal: channels on a major axis, dense (rows, LANE) slabs.
                pl.BlockSpec((1, Cin, rows, lane), lambda b, r: (b, 0, r, 0)),
            ],
            out_specs=pl.BlockSpec((1, Cout, rows, lane),
                                   lambda b, r: (b, 0, r, 0)),
        ),
        compiler_params=pltpu.CompilerParams(
            dimension_semantics=("parallel", "parallel")),
    )(M, X4)


def apply_small_matrix(M, X):
    """M: (Cout, Cin), X: (B, Cin, T)  ->  (B, Cout, T), float32.
    TODO(synk): PyTorch computes this matmul in float64 then casts to float32;
    the TPU kernel computes directly in float32 (negligible for a length-4
    contraction)."""
    B, Cin, T = X.shape
    Cout = M.shape[0]
    M = M.astype(jnp.float32)
    X = X.astype(jnp.float32)

    # Tiny problems (e.g. the targets tensor): launch + per-step overhead
    # dominates; let XLA fuse the einsum essentially for free.
    if T < LANE or X.size * 4 < _MIN_PALLAS_BYTES:
        return jnp.einsum("ij,bjt->bit", M, X)

    # LANE-divisible prefix through the kernel, ragged tail through einsum.
    n_rows = T // LANE
    t_main = n_rows * LANE
    out_main = _pallas_apply(M, X[:, :, :t_main].reshape(B, Cin, n_rows, LANE))
    out_main = out_main.reshape(B, Cout, t_main)
    if t_main == T:
        return out_main
    out_tail = jnp.einsum("ij,bjt->bit", M, X[:, :, t_main:])
    return jnp.concatenate([out_main, out_tail], axis=-1)


# ----------------------------------------------------------------------------
# Forward pass (p_comp = 1.0 -> rotation is always applied)
# ----------------------------------------------------------------------------

def spherical_rotation_forward(T_mat, R, X, targets):
    """X: (B, 4, T); targets: (B, 3, H, W) NCHW.
    Returns (T_mat @ X, rotated targets), both float32, matching
    SphericalRotation.forward with p_comp=1.0, ignore_labels=False."""
    out_x = apply_small_matrix(T_mat, X)

    B, three, H, Wd = targets.shape
    # torch: matmul(targets.permute(0,2,3,1), R.T).permute(0,3,1,2)
    #      == R @ targets along the channel axis.
    t_flat = targets.reshape(B, three, H * Wd)
    out_t = apply_small_matrix(R, t_flat).reshape(B, three, H, Wd)
    return out_x, out_t


# ----------------------------------------------------------------------------

if __name__ == "__main__":
    rotation_angles_rad = (0.3, 0.2, 0.5)           # deterministic rotation
    T_mat, R = compute_T_mat_and_R(rotation_angles_rad)

    key = jax.random.PRNGKey(0)
    kx, kt = jax.random.split(key)
    X = jax.random.normal(kx, (2, 4, 8192), dtype=jnp.float32)          # (B, C, T)
    targets = jax.random.normal(kt, (2, 3, 16, 32), dtype=jnp.float32)  # NCHW

    out_x, out_t = spherical_rotation_forward(T_mat, R, X, targets)
    out_x = jax.block_until_ready(out_x)
    out_t = jax.block_until_ready(out_t)

    # lightweight correctness check vs. pure-JAX reference
    ref_x = jnp.einsum("ij,bjt->bit", T_mat, X)
    ref_t = jnp.einsum("ij,bjhw->bihw", R, targets)
    assert out_x.shape == (2, 4, 8192) and out_t.shape == (2, 3, 16, 32)
    assert jnp.allclose(out_x, ref_x, atol=1e-4, rtol=1e-4)
    assert jnp.allclose(out_t, ref_t, atol=1e-4, rtol=1e-4)

    print("KERNEL_OK")
</pallas_src>

<mosaic_0001>
module attributes {stable_mosaic.version = 11 : i64} {
  func.func @kernel(%arg0: i32, %arg1: i32, %arg2: memref<4x4xf32, #tpu.memory_space<smem>>, %arg3: memref<1x4x16x512xf32, #tpu.memory_space<vmem>>, %arg4: memref<1x4x16x512xf32, #tpu.memory_space<vmem>>) attributes {dimension_semantics = [#tpu.dimension_semantics<parallel>, #tpu.dimension_semantics<parallel>], iteration_bounds = array<i64: 2, 1>, scalar_prefetch = 0 : i64, scratch_operands = 0 : i64, tpu.core_type = #tpu.core_type<tc>, window_params = [{transform_indices = @transform_0, window_bounds = array<i64: 4, 4>}, {transform_indices = @transform_1, window_bounds = array<i64: 1, 4, 16, 512>}, {transform_indices = @transform_2, window_bounds = array<i64: 1, 4, 16, 512>}]} {
    %c0 = arith.constant 0 : index
    %c0_0 = arith.constant 0 : index
    %0 = memref.load %arg2[%c0, %c0_0] : memref<4x4xf32, #tpu.memory_space<smem>>
    %c0_1 = arith.constant 0 : index
    %c1 = arith.constant 1 : index
    %1 = memref.load %arg2[%c0_1, %c1] : memref<4x4xf32, #tpu.memory_space<smem>>
    %c0_2 = arith.constant 0 : index
    %c2 = arith.constant 2 : index
    %2 = memref.load %arg2[%c0_2, %c2] : memref<4x4xf32, #tpu.memory_space<smem>>
    %c0_3 = arith.constant 0 : index
    %c3 = arith.constant 3 : index
    %3 = memref.load %arg2[%c0_3, %c3] : memref<4x4xf32, #tpu.memory_space<smem>>
    %c1_4 = arith.constant 1 : index
    %c0_5 = arith.constant 0 : index
    %4 = memref.load %arg2[%c1_4, %c0_5] : memref<4x4xf32, #tpu.memory_space<smem>>
    %c1_6 = arith.constant 1 : index
    %c1_7 = arith.constant 1 : index
    %5 = memref.load %arg2[%c1_6, %c1_7] : memref<4x4xf32, #tpu.memory_space<smem>>
    %c1_8 = arith.constant 1 : index
    %c2_9 = arith.constant 2 : index
    %6 = memref.load %arg2[%c1_8, %c2_9] : memref<4x4xf32, #tpu.memory_space<smem>>
    %c1_10 = arith.constant 1 : index
    %c3_11 = arith.constant 3 : index
    %7 = memref.load %arg2[%c1_10, %c3_11] : memref<4x4xf32, #tpu.memory_space<smem>>
    %c2_12 = arith.constant 2 : index
    %c0_13 = arith.constant 0 : index
    %8 = memref.load %arg2[%c2_12, %c0_13] : memref<4x4xf32, #tpu.memory_space<smem>>
    %c2_14 = arith.constant 2 : index
    %c1_15 = arith.constant 1 : index
    %9 = memref.load %arg2[%c2_14, %c1_15] : memref<4x4xf32, #tpu.memory_space<smem>>
    %c2_16 = arith.constant 2 : index
    %c2_17 = arith.constant 2 : index
    %10 = memref.load %arg2[%c2_16, %c2_17] : memref<4x4xf32, #tpu.memory_space<smem>>
    %c2_18 = arith.constant 2 : index
    %c3_19 = arith.constant 3 : index
    %11 = memref.load %arg2[%c2_18, %c3_19] : memref<4x4xf32, #tpu.memory_space<smem>>
    %c3_20 = arith.constant 3 : index
    %c0_21 = arith.constant 0 : index
    %12 = memref.load %arg2[%c3_20, %c0_21] : memref<4x4xf32, #tpu.memory_space<smem>>
    %c3_22 = arith.constant 3 : index
    %c1_23 = arith.constant 1 : index
    %13 = memref.load %arg2[%c3_22, %c1_23] : memref<4x4xf32, #tpu.memory_space<smem>>
    %c3_24 = arith.constant 3 : index
    %c2_25 = arith.constant 2 : index
    %14 = memref.load %arg2[%c3_24, %c2_25] : memref<4x4xf32, #tpu.memory_space<smem>>
    %c3_26 = arith.constant 3 : index
    %c3_27 = arith.constant 3 : index
    %15 = memref.load %arg2[%c3_26, %c3_27] : memref<4x4xf32, #tpu.memory_space<smem>>
    %c0_28 = arith.constant 0 : index
    %c0_29 = arith.constant 0 : index
    %c0_30 = arith.constant 0 : index
    %c0_31 = arith.constant 0 : index
    %16 = vector.load %arg3[%c0_28, %c0_29, %c0_30, %c0_31] : memref<1x4x16x512xf32, #tpu.memory_space<vmem>>, vector<1x1x16x512xf32>
    %17 = vector.shape_cast %16 : vector<1x1x16x512xf32> to vector<16x512xf32>
    %c0_32 = arith.constant 0 : index
    %c1_33 = arith.constant 1 : index
    %c0_34 = arith.constant 0 : index
    %c0_35 = arith.constant 0 : index
    %18 = vector.load %arg3[%c0_32, %c1_33, %c0_34, %c0_35] : memref<1x4x16x512xf32, #tpu.memory_space<vmem>>, vector<1x1x16x512xf32>
    %19 = vector.shape_cast %18 : vector<1x1x16x512xf32> to vector<16x512xf32>
    %c0_36 = arith.constant 0 : index
    %c2_37 = arith.constant 2 : index
    %c0_38 = arith.constant 0 : index
    %c0_39 = arith.constant 0 : index
    %20 = vector.load %arg3[%c0_36, %c2_37, %c0_38, %c0_39] : memref<1x4x16x512xf32, #tpu.memory_space<vmem>>, vector<1x1x16x512xf32>
    %21 = vector.shape_cast %20 : vector<1x1x16x512xf32> to vector<16x512xf32>
    %c0_40 = arith.constant 0 : index
    %c3_41 = arith.constant 3 : index
    %c0_42 = arith.constant 0 : index
    %c0_43 = arith.constant 0 : index
    %22 = vector.load %arg3[%c0_40, %c3_41, %c0_42, %c0_43] : memref<1x4x16x512xf32, #tpu.memory_space<vmem>>, vector<1x1x16x512xf32>
    %23 = vector.shape_cast %22 : vector<1x1x16x512xf32> to vector<16x512xf32>
    %24 = vector.broadcast %0 : f32 to vector<16x512xf32>
    %25 = arith.mulf %24, %17 : vector<16x512xf32>
    %26 = vector.broadcast %1 : f32 to vector<16x512xf32>
    %27 = arith.mulf %26, %19 : vector<16x512xf32>
    %28 = arith.addf %25, %27 : vector<16x512xf32>
    %29 = vector.broadcast %2 : f32 to vector<16x512xf32>
    %30 = arith.mulf %29, %21 : vector<16x512xf32>
    %31 = arith.addf %28, %30 : vector<16x512xf32>
    %32 = vector.broadcast %3 : f32 to vector<16x512xf32>
    %33 = arith.mulf %32, %23 : vector<16x512xf32>
    %34 = arith.addf %31, %33 : vector<16x512xf32>
    %c0_44 = arith.constant 0 : index
    %c0_45 = arith.constant 0 : index
    %c0_46 = arith.constant 0 : index
    %c0_47 = arith.constant 0 : index
    %35 = vector.load %arg4[%c0_44, %c0_45, %c0_46, %c0_47] : memref<1x4x16x512xf32, #tpu.memory_space<vmem>>, vector<1x1x16x512xf32>
    %36 = vector.shape_cast %35 : vector<1x1x16x512xf32> to vector<16x512xf32>
    %37 = vector.shape_cast %34 : vector<16x512xf32> to vector<1x1x16x512xf32>
    tpu.vector_store %arg4[%c0_44, %c0_45, %c0_46, %c0_47], %37 {strides = array<i32>} : memref<1x4x16x512xf32, #tpu.memory_space<vmem>>, vector<1x1x16x512xf32>,
    %38 = vector.broadcast %4 : f32 to vector<16x512xf32>
    %39 = arith.mulf %38, %17 : vector<16x512xf32>
    %40 = vector.broadcast %5 : f32 to vector<16x512xf32>
    %41 = arith.mulf %40, %19 : vector<16x512xf32>
    %42 = arith.addf %39, %41 : vector<16x512xf32>
    %43 = vector.broadcast %6 : f32 to vector<16x512xf32>
    %44 = arith.mulf %43, %21 : vector<16x512xf32>
    %45 = arith.addf %42, %44 : vector<16x512xf32>
    %46 = vector.broadcast %7 : f32 to vector<16x512xf32>
    %47 = arith.mulf %46, %23 : vector<16x512xf32>
    %48 = arith.addf %45, %47 : vector<16x512xf32>
    %c0_48 = arith.constant 0 : index
    %c1_49 = arith.constant 1 : index
    %c0_50 = arith.constant 0 : index
    %c0_51 = arith.constant 0 : index
    %49 = vector.load %arg4[%c0_48, %c1_49, %c0_50, %c0_51] : memref<1x4x16x512xf32, #tpu.memory_space<vmem>>, vector<1x1x16x512xf32>
    %50 = vector.shape_cast %49 : vector<1x1x16x512xf32> to vector<16x512xf32>
    %51 = vector.shape_cast %48 : vector<16x512xf32> to vector<1x1x16x512xf32>
    tpu.vector_store %arg4[%c0_48, %c1_49, %c0_50, %c0_51], %51 {strides = array<i32>} : memref<1x4x16x512xf32, #tpu.memory_space<vmem>>, vector<1x1x16x512xf32>,
    %52 = vector.broadcast %8 : f32 to vector<16x512xf32>
    %53 = arith.mulf %52, %17 : vector<16x512xf32>
    %54 = vector.broadcast %9 : f32 to vector<16x512xf32>
    %55 = arith.mulf %54, %19 : vector<16x512xf32>
    %56 = arith.addf %53, %55 : vector<16x512xf32>
    %57 = vector.broadcast %10 : f32 to vector<16x512xf32>
    %58 = arith.mulf %57, %21 : vector<16x512xf32>
    %59 = arith.addf %56, %58 : vector<16x512xf32>
    %60 = vector.broadcast %11 : f32 to vector<16x512xf32>
    %61 = arith.mulf %60, %23 : vector<16x512xf32>
    %62 = arith.addf %59, %61 : vector<16x512xf32>
    %c0_52 = arith.constant 0 : index
    %c2_53 = arith.constant 2 : index
    %c0_54 = arith.constant 0 : index
    %c0_55 = arith.constant 0 : index
    %63 = vector.load %arg4[%c0_52, %c2_53, %c0_54, %c0_55] : memref<1x4x16x512xf32, #tpu.memory_space<vmem>>, vector<1x1x16x512xf32>
    %64 = vector.shape_cast %63 : vector<1x1x16x512xf32> to vector<16x512xf32>
    %65 = vector.shape_cast %62 : vector<16x512xf32> to vector<1x1x16x512xf32>
    tpu.vector_store %arg4[%c0_52, %c2_53, %c0_54, %c0_55], %65 {strides = array<i32>} : memref<1x4x16x512xf32, #tpu.memory_space<vmem>>, vector<1x1x16x512xf32>,
    %66 = vector.broadcast %12 : f32 to vector<16x512xf32>
    %67 = arith.mulf %66, %17 : vector<16x512xf32>
    %68 = vector.broadcast %13 : f32 to vector<16x512xf32>
    %69 = arith.mulf %68, %19 : vector<16x512xf32>
    %70 = arith.addf %67, %69 : vector<16x512xf32>
    %71 = vector.broadcast %14 : f32 to vector<16x512xf32>
    %72 = arith.mulf %71, %21 : vector<16x512xf32>
    %73 = arith.addf %70, %72 : vector<16x512xf32>
    %74 = vector.broadcast %15 : f32 to vector<16x512xf32>
    %75 = arith.mulf %74, %23 : vector<16x512xf32>
    %76 = arith.addf %73, %75 : vector<16x512xf32>
    %c0_56 = arith.constant 0 : index
    %c3_57 = arith.constant 3 : index
    %c0_58 = arith.constant 0 : index
    %c0_59 = arith.constant 0 : index
    %77 = vector.load %arg4[%c0_56, %c3_57, %c0_58, %c0_59] : memref<1x4x16x512xf32, #tpu.memory_space<vmem>>, vector<1x1x16x512xf32>
    %78 = vector.shape_cast %77 : vector<1x1x16x512xf32> to vector<16x512xf32>
    %79 = vector.shape_cast %76 : vector<16x512xf32> to vector<1x1x16x512xf32>
    tpu.vector_store %arg4[%c0_56, %c3_57, %c0_58, %c0_59], %79 {strides = array<i32>} : memref<1x4x16x512xf32, #tpu.memory_space<vmem>>, vector<1x1x16x512xf32>,
    return
  }
  func.func @transform_0(%arg0: i32, %arg1: i32) -> (i32, i32) {
    %c0_i32 = arith.constant 0 : i32
    %c0_i32_0 = arith.constant 0 : i32
    %c0_i32_1 = arith.constant 0 : i32
    return %c0_i32, %c0_i32_0 : i32, i32
  }
  func.func @transform_1(%arg0: i32, %arg1: i32) -> (i32, i32, i32, i32) {
    %c0_i32 = arith.constant 0 : i32
    %c0_i32_0 = arith.constant 0 : i32
    %c0_i32_1 = arith.constant 0 : i32
    return %arg0, %c0_i32, %arg1, %c0_i32_0 : i32, i32, i32, i32
  }
  func.func @transform_2(%arg0: i32, %arg1: i32) -> (i32, i32, i32, i32) {
    %c0_i32 = arith.constant 0 : i32
    %c0_i32_0 = arith.constant 0 : i32
    %c0_i32_1 = arith.constant 0 : i32
    return %arg0, %c0_i32, %arg1, %c0_i32_0 : i32, i32, i32, i32
  }
}

</mosaic_0001>

<llo_original>
// kernel: tpu_custom_call.1
$region0: #{tpu_custom_call.1}
  #allocation0 [shape = 'u32[]', space=smem, size = 0x4, offset = 0x4, fixed_abs, tag = 'smem constant byte address 0x4 - core index']
  #allocation1 [shape = 'u32[144,128]{1,0:T(1,128)}', space=vmem, size = 0x12000, scoped, tag = 'internal scratch']
  %s0 = inlined_call_operand.hbm [shape: f32[4,4], index: 0, kind: input, shape index: {}]
  %s1 = inlined_call_operand.hbm [shape: f32[2,4,16,512], index: 1, kind: input, shape index: {}]
  %s2 = inlined_call_operand.hbm [shape: f32[2,4,16,512], index: 2, kind: output, shape index: {}]
  %s3 = sld [smem:[#allocation0]]
  $region49: #{tpu_custom_call.1} parent=0
    _
  %s5 = ssub.s32 1, %s3
  %s6 = scalar_select 0, %s5, %s3
  $region1: #{tpu_custom_call.1} parent=0
    #allocation2 [shape = 'u8[2048]{0}', space=smem, size = 0x800, scoped, tag = 'input window, operand 0, single buffered']
    #allocation3 [shape = 's32[2]{0}', space=sflag, size = 0x8, scoped, tag = 'scoped memory for tpu_custom_call.1']
    #allocation4 [shape = 's32[2]{0}', space=sflag, size = 0x8, scoped, tag = 'scoped memory for tpu_custom_call.1']
    #allocation5 [shape = 's32[2]{0}', space=sflag, size = 0x8, scoped, tag = 'scoped memory for tpu_custom_call.1']
    #allocation6 [shape = 'u8[262144]{0}', space=vmem, size = 0x40000, scoped, tag = 'input window, operand 1']
    #allocation7 [shape = 'u8[262144]{0}', space=vmem, size = 0x40000, scoped, tag = 'output window, operand 0']
    %7 = vsyncpa [#allocation5], 0
    %8 = vsyncpa [#allocation3], 0
    %s9 = scalar_lea.sflag [#allocation3], 1
    %10 = vsyncpa %s9, 0
    %11 = vsyncpa [#allocation4], 0
    %s12 = scalar_lea.sflag [#allocation4], 1
    %13 = vsyncpa %s12, 0
    loop: start=0, step=1, limit=4
    $region2: #{tpu_custom_call.1} parent=1 // loop_pre_header
      _
    $region3: #{tpu_custom_call.1} parent=1 // loop_header
      %s15 = sphi 0, %s19
      %p16 = scmp.ge.s32.totalorder %s15, 4
      %s22 = sphi 0, %s34
      %s23 = sphi 0, %s30
      %s24 = sphi 0, %s22
      %s25 = sphi 0, %s23
      %s26 = sphi 0, %s24
      %s27 = sphi 0, %s25
      %s35 = sphi 0, %s35
      %s37 = sphi 0, %s35
      %s38 = sphi 0, %s37
      %s52 = sphi 0, %s38
      %s60 = sphi 0, %s62
      %s63 = sphi 0, %s60
      %s64 = sphi 0, %s63
      %s80 = sphi 0, %s64
      %s88 = sphi 0, %s90
      %s91 = sphi 0, %s88
      %s92 = sphi 0, %s91
      %s108 = sphi 0, %s92
    $region4: #{tpu_custom_call.1} parent=1 // loop_header_branch
      %18 = sbr.rel (%p16) target = $region8
    $region5: #{tpu_custom_call.1} parent=1 // loop_body
      %s20 = ssub.s32 %s15, 1
      %s21 = ssub.s32 %s15, 2
      %s28 = sadd.s32 1, %s23
      %p29 = scmp.ge.s32.totalorder %s28, 1
      %s30 = scalar_select %p29, 0, %s28
      %s31 = sadd.s32 1, %s22
      %s32 = scalar_select %p29, %s31, %s22
      %p33 = scmp.ge.s32.totalorder %s32, 2
      %s34 = scalar_select %p33, 0, %s32
      %s36 = sadd.s32 %s35, 1
      %p39 = scmp.eq.s32.totalorder %s15, 1
      %p40 = scmp.ne.s32.totalorder %s35, %s37
      %p41 = scmp.eq.s32.totalorder %s15, 0
      %p42 = por %p40, %p41
      %p43 = scmp.ne.s32.totalorder %s35, %s37
      %p44 = scmp.eq.s32.totalorder %s20, 1
      %p45 = por %p43, %p44
      %p46 = scmp.ne.s32.totalorder %s37, %s38
      %p47 = scmp.eq.s32.totalorder %s20, 0
      %p48 = por %p46, %p47
      %p49 = scmp.ne.s32.totalorder %s37, %s38
      %p50 = scmp.eq.s32.totalorder %s21, 1
      %p51 = por %p49, %p50
      %p53 = scmp.ne.s32.totalorder %s38, %s52
      %p54 = scmp.eq.s32.totalorder %s21, 0
      %p55 = por %p53, %p54
      %s56 = ssub.s32 %s22, %s34
      %s57 = ssub.s32 %s23, %s30
      %s58 = sor.u32 %s56, %s57
      %p59 = scmp.eq.s32.totalorder %s58, 0
      %s61 = sadd.s32 %s60, 1
      %s62 = scalar_select %p59, %s60, %s61
      %p65 = pneg %p59
      %p66 = scmp.eq.s32.totalorder %s15, 1
      %p67 = por %p65, %p66
      %p68 = scmp.ne.s32.totalorder %s60, %s63
      %p69 = scmp.eq.s32.totalorder %s15, 0
      %p70 = por %p68, %p69
      %p71 = scmp.ne.s32.totalorder %s60, %s63
      %p72 = scmp.eq.s32.totalorder %s20, 1
      %p73 = por %p71, %p72
      %p74 = scmp.ne.s32.totalorder %s63, %s64
      %p75 = scmp.eq.s32.totalorder %s20, 0
      %p76 = por %p74, %p75
      %p77 = scmp.ne.s32.totalorder %s63, %s64
      %p78 = scmp.eq.s32.totalorder %s21, 1
      %p79 = por %p77, %p78
      %p81 = scmp.ne.s32.totalorder %s64, %s80
      %p82 = scmp.eq.s32.totalorder %s21, 0
      %p83 = por %p81, %p82
      %s84 = ssub.s32 %s22, %s34
      %s85 = ssub.s32 %s23, %s30
      %s86 = sor.u32 %s84, %s85
      %p87 = scmp.eq.s32.totalorder %s86, 0
      %s89 = sadd.s32 %s88, 1
      %s90 = scalar_select %p87, %s88, %s89
      %p93 = pneg %p87
      %p94 = scmp.eq.s32.totalorder %s15, 1
      %p95 = por %p93, %p94
      %p96 = scmp.ne.s32.totalorder %s88, %s91
      %p97 = scmp.eq.s32.totalorder %s15, 0
      %p98 = por %p96, %p97
      %p99 = scmp.ne.s32.totalorder %s88, %s91
      %p100 = scmp.eq.s32.totalorder %s20, 1
      %p101 = por %p99, %p100
      %p102 = scmp.ne.s32.totalorder %s91, %s92
      %p103 = scmp.eq.s32.totalorder %s20, 0
      %p104 = por %p102, %p103
      %p105 = scmp.ne.s32.totalorder %s91, %s92
      %p106 = scmp.eq.s32.totalorder %s21, 1
      %p107 = por %p105, %p106
      %p109 = scmp.ne.s32.totalorder %s92, %s108
      %p110 = scmp.eq.s32.totalorder %s21, 0
      %p111 = por %p109, %p110
      %p112 = scmp.le.s32.totalorder 1, %s15
      %p113 = scmp.lt.s32.totalorder %s15, 3
      %p114 = pnand %p112, %p113
      %p115 = pneg %p114
      // Predicated region
      $region9: #{tpu_custom_call.1} parent=5 // pred_check
        _
      $region10: #{tpu_custom_call.1} parent=5 // pred_check_branch
        %117 = sbr.rel (%p114) target = $region12
      $region11: #{tpu_custom_call.1} parent=5 // pred_region
        %s118 = ssub.s32 %s15, 1
        // Predicated region
        $region13: #{tpu_custom_call.1} parent=11 // pred_check
          %p119 = pneg %p48
        $region14: #{tpu_custom_call.1} parent=11 // pred_check_branch
          %121 = sbr.rel (%p119) target = $region16
        $region15: #{tpu_custom_call.1} parent=11 // pred_region
          %s123 = ssub.s32 64, 64
          %124 = vsyncadd [#allocation5], %s123
          %127 = dma.hbm_to_smem %s0, 64, [#allocation2], [#allocation5]
        $region16: #{tpu_custom_call.1} parent=11 // pred_fallthru
          _
      $region12: #{tpu_custom_call.1} parent=5 // pred_fallthru
        _
      %p128 = scmp.lt.s32.totalorder %s15, 2
      // Predicated region
      $region17: #{tpu_custom_call.1} parent=5 // pred_check
        %p129 = pneg %p128
      $region18: #{tpu_custom_call.1} parent=5 // pred_check_branch
        %131 = sbr.rel (%p129) target = $region20
      $region19: #{tpu_custom_call.1} parent=5 // pred_region
        // Predicated region
        $region21: #{tpu_custom_call.1} parent=19 // pred_check
          %p132 = pneg %p70
        $region22: #{tpu_custom_call.1} parent=19 // pred_check_branch
          %134 = sbr.rel (%p132) target = $region24
        $region23: #{tpu_custom_call.1} parent=19 // pred_region
          %s135 = sand.u32 %s60, 1
          %s136 = scalar_lea.sflag [#allocation3], %s135
          %s137 = sand.u32 %s60, 1
          %s138 = smul.addr %s137, 256
          %s139 = scalar_lea.vmem [#allocation6], %s138
          %s140 = smul.u32 2, %s23
          %s142 = ssub.s32 4096, 4096
          %143 = vsyncadd %s136, %s142
          %s144 = smul.addr %s140, 4
          %s145 = smul.addr %s22, 32
          %s146 = sadd.s32 %s144, %s145
          %s147 = smul.addr %s146, 128
          %s148 = scalar_lea.hbm %s1, %s147
          %s149 = sshll.u32 %s139, 4
          %s150 = int_to_ptr.vmem [resolvable:$true] %s149
          %155 = dma.hbm_to_vmem [thread:$0]  %s148, 4096, %s150, %s136, 512, 512, 32
        $region24: #{tpu_custom_call.1} parent=19 // pred_fallthru
          _
      $region20: #{tpu_custom_call.1} parent=5 // pred_fallthru
        _
      %p156 = scmp.le.s32.totalorder 1, %s15
      %p157 = scmp.lt.s32.totalorder %s15, 3
      %p158 = pnand %p156, %p157
      %p159 = pneg %p158
      // Predicated region
      $region25: #{tpu_custom_call.1} parent=5 // pred_check
        _
      $region26: #{tpu_custom_call.1} parent=5 // pred_check_branch
        %161 = sbr.rel (%p158) target = $region28
      $region27: #{tpu_custom_call.1} parent=5 // pred_region
        %s162 = ssub.s32 %s15, 1
        // Predicated region
        $region29: #{tpu_custom_call.1} parent=27 // pred_check
          %p163 = pneg %p48
        $region30: #{tpu_custom_call.1} parent=27 // pred_check_branch
          %165 = sbr.rel (%p163) target = $region32
        $region31: #{tpu_custom_call.1} parent=27 // pred_region
          %166 = dma.done [#allocation5], 64
        $region32: #{tpu_custom_call.1} parent=27 // pred_fallthru
          _
        %s167 = sand.u32 %s63, 1
        %s168 = scalar_lea.sflag [#allocation3], %s167
        %s169 = sand.u32 %s63, 1
        %s170 = smul.addr %s169, 256
        %s171 = scalar_lea.vmem [#allocation6], %s170
        // Predicated region
        $region33: #{tpu_custom_call.1} parent=27 // pred_check
          %p172 = pneg %p76
        $region34: #{tpu_custom_call.1} parent=27 // pred_check_branch
          %174 = sbr.rel (%p172) target = $region36
        $region35: #{tpu_custom_call.1} parent=27 // pred_region
          %175 = dma.done %s168, 4096
        $region36: #{tpu_custom_call.1} parent=27 // pred_fallthru
          _
        %176 = sfence
        %p177 = pneg %p48
        %p178 = pneg %p45
        %s179 = sand.u32 %s63, 1
        %s180 = scalar_lea.sflag [#allocation3], %s179
        %s181 = sand.u32 %s63, 1
        %s182 = smul.addr %s181, 256
        %s183 = scalar_lea.vmem [#allocation6], %s182
        %p184 = pneg %p76
        %p185 = pneg %p73
        %p186 = pneg %p104
        %p187 = pneg %p101
        %s188 = sand.u32 %s91, 1
        %s189 = scalar_lea.sflag [#allocation4], %s188
        %s190 = sand.u32 %s91, 1
        %s191 = smul.addr %s190, 256
        %s192 = scalar_lea.vmem [#allocation7], %s191
        %s193 = smul.u32 2, %s25
        %s194 = smul.u32 2, %s25
        %s195 = sld [smem:[#allocation2]]
        %s196 = sld [smem:[#allocation2 + $0x1]]
        %s197 = sld [smem:[#allocation2 + $0x2]]
        %s198 = sld [smem:[#allocation2 + $0x3]]
        %s199 = sld [smem:[#allocation2 + $0x80]]
        %s200 = sld [smem:[#allocation2 + $0x81]]
        %s201 = sld [smem:[#allocation2 + $0x82]]
        %s202 = sld [smem:[#allocation2 + $0x83]]
        %s203 = sld [smem:[#allocation2 + $0x100]]
        %s204 = sld [smem:[#allocation2 + $0x101]]
        %s205 = sld [smem:[#allocation2 + $0x102]]
        %s206 = sld [smem:[#allocation2 + $0x103]]
        %s207 = sld [smem:[#allocation2 + $0x180]]
        %s208 = sld [smem:[#allocation2 + $0x181]]
        %s209 = sld [smem:[#allocation2 + $0x182]]
        %s210 = sld [smem:[#allocation2 + $0x183]]
        %v211 = vld [vmem:[%s171] sm:$0xff]
        %v212 = vld [vmem:[%s171 + $0x8] sm:$0xff]
        %v213 = vld [vmem:[%s171 + $0x10] sm:$0xff]
        %v214 = vld [vmem:[%s171 + $0x18] sm:$0xff]
        %v215 = vld [vmem:[%s171 + $0x20] sm:$0xff]
        %v216 = vld [vmem:[%s171 + $0x28] sm:$0xff]
        %v217 = vld [vmem:[%s171 + $0x30] sm:$0xff]
        %v218 = vld [vmem:[%s171 + $0x38] sm:$0xff]
        %s219 = scalar_lea.vmem %s171, 64 [#allocation6]
        %v220 = vld [vmem:[%s219] sm:$0xff]
        %v221 = vld [vmem:[%s219 + $0x8] sm:$0xff]
        %v222 = vld [vmem:[%s219 + $0x10] sm:$0xff]
        %v223 = vld [vmem:[%s219 + $0x18] sm:$0xff]
        %v224 = vld [vmem:[%s219 + $0x20] sm:$0xff]
        %v225 = vld [vmem:[%s219 + $0x28] sm:$0xff]
        %v226 = vld [vmem:[%s219 + $0x30] sm:$0xff]
        %v227 = vld [vmem:[%s219 + $0x38] sm:$0xff]
        %s228 = scalar_lea.vmem %s171, 128 [#allocation6]
        %v229 = vld [vmem:[%s228] sm:$0xff]
        %v230 = vld [vmem:[%s228 + $0x8] sm:$0xff]
        %v231 = vld [vmem:[%s228 + $0x10] sm:$0xff]
        %v232 = vld [vmem:[%s228 + $0x18] sm:$0xff]
        %v233 = vld [vmem:[%s228 + $0x20] sm:$0xff]
        %v234 = vld [vmem:[%s228 + $0x28] sm:$0xff]
        %v235 = vld [vmem:[%s228 + $0x30] sm:$0xff]
        %v236 = vld [vmem:[%s228 + $0x38] sm:$0xff]
        %s237 = scalar_lea.vmem %s171, 192 [#allocation6]
        %v238 = vld [vmem:[%s237] sm:$0xff]
        %v239 = vld [vmem:[%s237 + $0x8] sm:$0xff]
        %v240 = vld [vmem:[%s237 + $0x10] sm:$0xff]
        %v241 = vld [vmem:[%s237 + $0x18] sm:$0xff]
        %v242 = vld [vmem:[%s237 + $0x20] sm:$0xff]
        %v243 = vld [vmem:[%s237 + $0x28] sm:$0xff]
        %v244 = vld [vmem:[%s237 + $0x30] sm:$0xff]
        %v245 = vld [vmem:[%s237 + $0x38] sm:$0xff]
        %v246 = vstv %s195
        %v247 = vmul.f32 %v246, %v211
        %v248 = vmul.f32 %v246, %v212
        %v249 = vmul.f32 %v246, %v213
        %v250 = vmul.f32 %v246, %v214
        %v251 = vmul.f32 %v246, %v215
        %v252 = vmul.f32 %v246, %v216
        %v253 = vmul.f32 %v246, %v217
        %v254 = vmul.f32 %v246, %v218
        %v255 = vstv %s196
        %v256 = vmul.f32 %v255, %v220
        %v257 = vmul.f32 %v255, %v221
        %v258 = vmul.f32 %v255, %v222
        %v259 = vmul.f32 %v255, %v223
        %v260 = vmul.f32 %v255, %v224
        %v261 = vmul.f32 %v255, %v225
        %v262 = vmul.f32 %v255, %v226
        %v263 = vmul.f32 %v255, %v227
        %v264 = vadd.f32 %v247, %v256
        %v265 = vadd.f32 %v248, %v257
        %v266 = vadd.f32 %v249, %v258
        %v267 = vadd.f32 %v250, %v259
        %v268 = vadd.f32 %v251, %v260
        %v269 = vadd.f32 %v252, %v261
        %v270 = vadd.f32 %v253, %v262
        %v271 = vadd.f32 %v254, %v263
        %v272 = vstv %s197
        %v273 = vmul.f32 %v272, %v229
        %v274 = vmul.f32 %v272, %v230
        %v275 = vmul.f32 %v272, %v231
        %v276 = vmul.f32 %v272, %v232
        %v277 = vmul.f32 %v272, %v233
        %v278 = vmul.f32 %v272, %v234
        %v279 = vmul.f32 %v272, %v235
        %v280 = vmul.f32 %v272, %v236
        %v281 = vadd.f32 %v264, %v273
        %v282 = vadd.f32 %v265, %v274
        %v283 = vadd.f32 %v266, %v275
        %v284 = vadd.f32 %v267, %v276
        %v285 = vadd.f32 %v268, %v277
        %v286 = vadd.f32 %v269, %v278
        %v287 = vadd.f32 %v270, %v279
        %v288 = vadd.f32 %v271, %v280
        %v289 = vstv %s198
        %v290 = vmul.f32 %v289, %v238
        %v291 = vmul.f32 %v289, %v239
        %v292 = vmul.f32 %v289, %v240
        %v293 = vmul.f32 %v289, %v241
        %v294 = vmul.f32 %v289, %v242
        %v295 = vmul.f32 %v289, %v243
        %v296 = vmul.f32 %v289, %v244
        %v297 = vmul.f32 %v289, %v245
        %v298 = vadd.f32 %v281, %v290
        %v299 = vadd.f32 %v282, %v291
        %v300 = vadd.f32 %v283, %v292
        %v301 = vadd.f32 %v284, %v293
        %v302 = vadd.f32 %v285, %v294
        %v303 = vadd.f32 %v286, %v295
        %v304 = vadd.f32 %v287, %v296
        %v305 = vadd.f32 %v288, %v297
        %306 = vst [vmem:[%s192] sm:$0xff] %v298
        %307 = vst [vmem:[%s192 + $0x8] sm:$0xff] %v299
        %308 = vst [vmem:[%s192 + $0x10] sm:$0xff] %v300
        %309 = vst [vmem:[%s192 + $0x18] sm:$0xff] %v301
        %310 = vst [vmem:[%s192 + $0x20] sm:$0xff] %v302
        %311 = vst [vmem:[%s192 + $0x28] sm:$0xff] %v303
        %312 = vst [vmem:[%s192 + $0x30] sm:$0xff] %v304
        %313 = vst [vmem:[%s192 + $0x38] sm:$0xff] %v305
        %v314 = vstv %s199
        %v315 = vmul.f32 %v314, %v211
        %v316 = vmul.f32 %v314, %v212
        %v317 = vmul.f32 %v314, %v213
        %v318 = vmul.f32 %v314, %v214
        %v319 = vmul.f32 %v314, %v215
        %v320 = vmul.f32 %v314, %v216
        %v321 = vmul.f32 %v314, %v217
        %v322 = vmul.f32 %v314, %v218
        %v323 = vstv %s200
        %v324 = vmul.f32 %v323, %v220
        %v325 = vmul.f32 %v323, %v221
        %v326 = vmul.f32 %v323, %v222
        %v327 = vmul.f32 %v323, %v223
        %v328 = vmul.f32 %v323, %v224
        %v329 = vmul.f32 %v323, %v225
        %v330 = vmul.f32 %v323, %v226
        %v331 = vmul.f32 %v323, %v227
        %v332 = vadd.f32 %v315, %v324
        %v333 = vadd.f32 %v316, %v325
        %v334 = vadd.f32 %v317, %v326
        %v335 = vadd.f32 %v318, %v327
        %v336 = vadd.f32 %v319, %v328
        %v337 = vadd.f32 %v320, %v329
        %v338 = vadd.f32 %v321, %v330
        %v339 = vadd.f32 %v322, %v331
        %v340 = vstv %s201
        %v341 = vmul.f32 %v340, %v229
        %v342 = vmul.f32 %v340, %v230
        %v343 = vmul.f32 %v340, %v231
        %v344 = vmul.f32 %v340, %v232
        %v345 = vmul.f32 %v340, %v233
        %v346 = vmul.f32 %v340, %v234
        %v347 = vmul.f32 %v340, %v235
        %v348 = vmul.f32 %v340, %v236
        %v349 = vadd.f32 %v332, %v341
        %v350 = vadd.f32 %v333, %v342
        %v351 = vadd.f32 %v334, %v343
        %v352 = vadd.f32 %v335, %v344
        %v353 = vadd.f32 %v336, %v345
        %v354 = vadd.f32 %v337, %v346
        %v355 = vadd.f32 %v338, %v347
        %v356 = vadd.f32 %v339, %v348
        %v357 = vstv %s202
        %v358 = vmul.f32 %v357, %v238
        %v359 = vmul.f32 %v357, %v239
        %v360 = vmul.f32 %v357, %v240
        %v361 = vmul.f32 %v357, %v241
        %v362 = vmul.f32 %v357, %v242
        %v363 = vmul.f32 %v357, %v243
        %v364 = vmul.f32 %v357, %v244
        %v365 = vmul.f32 %v357, %v245
        %v366 = vadd.f32 %v349, %v358
        %v367 = vadd.f32 %v350, %v359
        %v368 = vadd.f32 %v351, %v360
        %v369 = vadd.f32 %v352, %v361
        %v370 = vadd.f32 %v353, %v362
        %v371 = vadd.f32 %v354, %v363
        %v372 = vadd.f32 %v355, %v364
        %v373 = vadd.f32 %v356, %v365
        %s374 = scalar_lea.vmem %s192, 64 [#allocation7]
        %375 = vst [vmem:[%s374] sm:$0xff] %v366
        %376 = vst [vmem:[%s374 + $0x8] sm:$0xff] %v367
        %377 = vst [vmem:[%s374 + $0x10] sm:$0xff] %v368
        %378 = vst [vmem:[%s374 + $0x18] sm:$0xff] %v369
        %379 = vst [vmem:[%s374 + $0x20] sm:$0xff] %v370
        %380 = vst [vmem:[%s374 + $0x28] sm:$0xff] %v371
        %381 = vst [vmem:[%s374 + $0x30] sm:$0xff] %v372
        %382 = vst [vmem:[%s374 + $0x38] sm:$0xff] %v373
        %v383 = vstv %s203
        %v384 = vmul.f32 %v383, %v211
        %v385 = vmul.f32 %v383, %v212
        %v386 = vmul.f32 %v383, %v213
        %v387 = vmul.f32 %v383, %v214
        %v388 = vmul.f32 %v383, %v215
        %v389 = vmul.f32 %v383, %v216
        %v390 = vmul.f32 %v383, %v217
        %v391 = vmul.f32 %v383, %v218
        %v392 = vstv %s204
        %v393 = vmul.f32 %v392, %v220
        %v394 = vmul.f32 %v392, %v221
        %v395 = vmul.f32 %v392, %v222
        %v396 = vmul.f32 %v392, %v223
        %v397 = vmul.f32 %v392, %v224
        %v398 = vmul.f32 %v392, %v225
        %v399 = vmul.f32 %v392, %v226
        %v400 = vmul.f32 %v392, %v227
        %v401 = vadd.f32 %v384, %v393
        %v402 = vadd.f32 %v385, %v394
        %v403 = vadd.f32 %v386, %v395
        %v404 = vadd.f32 %v387, %v396
        %v405 = vadd.f32 %v388, %v397
        %v406 = vadd.f32 %v389, %v398
        %v407 = vadd.f32 %v390, %v399
        %v408 = vadd.f32 %v391, %v400
        %v409 = vstv %s205
        %v410 = vmul.f32 %v409, %v229
        %v411 = vmul.f32 %v409, %v230
        %v412 = vmul.f32 %v409, %v231
        %v413 = vmul.f32 %v409, %v232
        %v414 = vmul.f32 %v409, %v233
        %v415 = vmul.f32 %v409, %v234
        %v416 = vmul.f32 %v409, %v235
        %v417 = vmul.f32 %v409, %v236
        %v418 = vadd.f32 %v401, %v410
        %v419 = vadd.f32 %v402, %v411
        %v420 = vadd.f32 %v403, %v412
        %v421 = vadd.f32 %v404, %v413
        %v422 = vadd.f32 %v405, %v414
        %v423 = vadd.f32 %v406, %v415
        %v424 = vadd.f32 %v407, %v416
        %v425 = vadd.f32 %v408, %v417
        %v426 = vstv %s206
        %v427 = vmul.f32 %v426, %v238
        %v428 = vmul.f32 %v426, %v239
        %v429 = vmul.f32 %v426, %v240
        %v430 = vmul.f32 %v426, %v241
        %v431 = vmul.f32 %v426, %v242
        %v432 = vmul.f32 %v426, %v243
        %v433 = vmul.f32 %v426, %v244
        %v434 = vmul.f32 %v426, %v245
        %v435 = vadd.f32 %v418, %v427
        %v436 = vadd.f32 %v419, %v428
        %v437 = vadd.f32 %v420, %v429
        %v438 = vadd.f32 %v421, %v430
        %v439 = vadd.f32 %v422, %v431
        %v440 = vadd.f32 %v423, %v432
        %v441 = vadd.f32 %v424, %v433
        %v442 = vadd.f32 %v425, %v434
        %s443 = scalar_lea.vmem %s192, 128 [#allocation7]
        %444 = vst [vmem:[%s443] sm:$0xff] %v435
        %445 = vst [vmem:[%s443 + $0x8] sm:$0xff] %v436
        %446 = vst [vmem:[%s443 + $0x10] sm:$0xff] %v437
        %447 = vst [vmem:[%s443 + $0x18] sm:$0xff] %v438
        %448 = vst [vmem:[%s443 + $0x20] sm:$0xff] %v439
        %449 = vst [vmem:[%s443 + $0x28] sm:$0xff] %v440
        %450 = vst [vmem:[%s443 + $0x30] sm:$0xff] %v441
        %451 = vst [vmem:[%s443 + $0x38] sm:$0xff] %v442
        %v452 = vstv %s207
        %v453 = vmul.f32 %v452, %v211
        %v454 = vmul.f32 %v452, %v212
        %v455 = vmul.f32 %v452, %v213
        %v456 = vmul.f32 %v452, %v214
        %v457 = vmul.f32 %v452, %v215
        %v458 = vmul.f32 %v452, %v216
        %v459 = vmul.f32 %v452, %v217
        %v460 = vmul.f32 %v452, %v218
        %v461 = vstv %s208
        %v462 = vmul.f32 %v461, %v220
        %v463 = vmul.f32 %v461, %v221
        %v464 = vmul.f32 %v461, %v222
        %v465 = vmul.f32 %v461, %v223
        %v466 = vmul.f32 %v461, %v224
        %v467 = vmul.f32 %v461, %v225
        %v468 = vmul.f32 %v461, %v226
        %v469 = vmul.f32 %v461, %v227
        %v470 = vadd.f32 %v453, %v462
        %v471 = vadd.f32 %v454, %v463
        %v472 = vadd.f32 %v455, %v464
        %v473 = vadd.f32 %v456, %v465
        %v474 = vadd.f32 %v457, %v466
        %v475 = vadd.f32 %v458, %v467
        %v476 = vadd.f32 %v459, %v468
        %v477 = vadd.f32 %v460, %v469
        %v478 = vstv %s209
        %v479 = vmul.f32 %v478, %v229
        %v480 = vmul.f32 %v478, %v230
        %v481 = vmul.f32 %v478, %v231
        %v482 = vmul.f32 %v478, %v232
        %v483 = vmul.f32 %v478, %v233
        %v484 = vmul.f32 %v478, %v234
        %v485 = vmul.f32 %v478, %v235
        %v486 = vmul.f32 %v478, %v236
        %v487 = vadd.f32 %v470, %v479
        %v488 = vadd.f32 %v471, %v480
        %v489 = vadd.f32 %v472, %v481
        %v490 = vadd.f32 %v473, %v482
        %v491 = vadd.f32 %v474, %v483
        %v492 = vadd.f32 %v475, %v484
        %v493 = vadd.f32 %v476, %v485
        %v494 = vadd.f32 %v477, %v486
        %v495 = vstv %s210
        %v496 = vmul.f32 %v495, %v238
        %v497 = vmul.f32 %v495, %v239
        %v498 = vmul.f32 %v495, %v240
        %v499 = vmul.f32 %v495, %v241
        %v500 = vmul.f32 %v495, %v242
        %v501 = vmul.f32 %v495, %v243
        %v502 = vmul.f32 %v495, %v244
        %v503 = vmul.f32 %v495, %v245
        %v504 = vadd.f32 %v487, %v496
        %v505 = vadd.f32 %v488, %v497
        %v506 = vadd.f32 %v489, %v498
        %v507 = vadd.f32 %v490, %v499
        %v508 = vadd.f32 %v491, %v500
        %v509 = vadd.f32 %v492, %v501
        %v510 = vadd.f32 %v493, %v502
        %v511 = vadd.f32 %v494, %v503
        %s512 = scalar_lea.vmem %s192, 192 [#allocation7]
        %513 = vst [vmem:[%s512] sm:$0xff] %v504
        %514 = vst [vmem:[%s512 + $0x8] sm:$0xff] %v505
        %515 = vst [vmem:[%s512 + $0x10] sm:$0xff] %v506
        %516 = vst [vmem:[%s512 + $0x18] sm:$0xff] %v507
        %517 = vst [vmem:[%s512 + $0x20] sm:$0xff] %v508
        %518 = vst [vmem:[%s512 + $0x28] sm:$0xff] %v509
        %519 = vst [vmem:[%s512 + $0x30] sm:$0xff] %v510
        %520 = vst [vmem:[%s512 + $0x38] sm:$0xff] %v511
        %s521 = sand.u32 %s91, 1
        %s522 = scalar_lea.sflag [#allocation4], %s521
        %s523 = sand.u32 %s91, 1
        %s524 = smul.addr %s523, 256
        %s525 = scalar_lea.vmem [#allocation7], %s524
        // Predicated region
        $region37: #{tpu_custom_call.1} parent=27 // pred_check
          %p526 = pneg %p101
        $region38: #{tpu_custom_call.1} parent=27 // pred_check_branch
          %528 = sbr.rel (%p526) target = $region40
        $region39: #{tpu_custom_call.1} parent=27 // pred_region
          %s529 = smul.u32 2, %s25
          %s531 = ssub.s32 4096, 4096
          %532 = vsyncadd %s522, %s531
          %s533 = smul.addr %s529, 4
          %s534 = smul.addr %s24, 32
          %s535 = sadd.s32 %s533, %s534
          %s536 = smul.addr %s535, 128
          %s537 = scalar_lea.hbm %s2, %s536
          %s538 = sshll.u32 %s525, 4
          %s539 = int_to_ptr.vmem [resolvable:$true] %s538
          %544 = dma.vmem_to_hbm [thread:$0]  %s539, 4096, %s537, %s522, 512, 512, 32
        $region40: #{tpu_custom_call.1} parent=27 // pred_fallthru
          _
      $region28: #{tpu_custom_call.1} parent=5 // pred_fallthru
        _
      %p545 = scmp.le.s32.totalorder 2, %s15
      // Predicated region
      $region41: #{tpu_custom_call.1} parent=5 // pred_check
        %p546 = pneg %p545
      $region42: #{tpu_custom_call.1} parent=5 // pred_check_branch
        %548 = sbr.rel (%p546) target = $region44
      $region43: #{tpu_custom_call.1} parent=5 // pred_region
        %s549 = ssub.s32 %s15, 2
        // Predicated region
        $region45: #{tpu_custom_call.1} parent=43 // pred_check
          %p550 = pneg %p107
        $region46: #{tpu_custom_call.1} parent=43 // pred_check_branch
          %552 = sbr.rel (%p550) target = $region48
        $region47: #{tpu_custom_call.1} parent=43 // pred_region
          %s553 = sand.u32 %s92, 1
          %s554 = scalar_lea.sflag [#allocation4], %s553
          %s555 = sand.u32 %s92, 1
          %s556 = smul.addr %s555, 256
          %s557 = scalar_lea.vmem [#allocation7], %s556
          %558 = dma.done %s554, 4096
        $region48: #{tpu_custom_call.1} parent=43 // pred_fallthru
          _
      $region44: #{tpu_custom_call.1} parent=5 // pred_fallthru
        _
    $region6: #{tpu_custom_call.1} parent=1 // loop_footer
      %s19 = sadd.s32 1, %s15
    $region7: #{tpu_custom_call.1} parent=1 // loop_footer_branch
      %14 = sbr.rel target = $region3
    $region8: #{tpu_custom_call.1} parent=1 // loop_exit
      _
    %559 = vsyncpa [#allocation3], 1
    %s560 = scalar_lea.sflag [#allocation3], 1
    %561 = vsyncpa %s560, 1
    %562 = vsyncpa [#allocation4], 1
    %s563 = scalar_lea.sflag [#allocation4], 1
    %564 = vsyncpa %s563, 1
    %565 = vsyncpa [#allocation5], 1
    %s566 = scalar_lea.sflag [#allocation5], 1
    %567 = vsyncpa %s566, 1

</llo_original>
